<compile_context>
chip_gen: v6e
topology: v6e:2x2x1
jax: 0.10.0
libtpu: 0.0.40
codegen_flags: <defaults>
</compile_context>

<pallas_src>
from functools import partial

import numpy as np
import jax
import jax.numpy as jnp
from jax.experimental import pallas as pl
from jax.experimental.pallas import tpu as pltpu


def _coordconv_kernel(x_ref, wm_ref, bias_ref, masks_ref, gamma_ref, beta_ref,
                      o_ref, xpat_ref, *, width, ksize, pad, eps, num_valid,
                      matmul_dtype):
    """Fused CoordConv: 3x3 'same' conv + training-mode BatchNorm2d + ReLU.

    x_ref:     (C, Np)         input with batch stacked on lanes; Np = pad128(B*H*W)
    wm_ref:    (Cout, 9*C)     conv weight for image channels, k = (kh*KW+kw)*C + c
    bias_ref:  (Cout, Np)      precomputed coord-channel conv contribution (tiled over B)
    masks_ref: (9, Np)         per-tap zero-padding validity masks (0 on padded lanes)
    gamma_ref, beta_ref: (Cout, 1) BN affine parameters
    o_ref:     (Cout, Np)      output (lane-dense)
    xpat_ref:  (9*C, Np)       VMEM scratch: im2col patch matrix
    """
    C, Np = x_ref.shape

    # Hoisted loads; all elementwise math stays in f32 (v5e has no bf16 VPU).
    xv = x_ref[...].astype(jnp.float32)          # (C, Np)
    masks = masks_ref[...]                       # (9, Np)

    # ---- im2col: one lane rotation (XLU) + one mask multiply per tap, whole-batch slab ----
    for kh in range(ksize):
        for kw in range(ksize):
            t = kh * ksize + kw
            d = (kh - pad) * width + (kw - pad)          # flat-index shift of this tap
            if d == 0:
                xpat_ref[t * C:(t + 1) * C, :] = xv      # center tap: mask is identity
            else:
                shifted = pltpu.roll(xv, (-d) % Np, 1)   # shifted[p] = xv[(p + d) % Np]
                xpat_ref[t * C:(t + 1) * C, :] = shifted * masks[t:t + 1, :]

    # ---- conv: ONE MXU matmul (Cout, 9C) x (9C, B*HW); cast only at the matmul boundary ----
    patches = xpat_ref[...].astype(matmul_dtype)
    w = wm_ref[...].astype(matmul_dtype)
    y = jnp.dot(w, patches, preferred_element_type=jnp.float32) + bias_ref[...]  # (Cout, Np)

    # ---- BatchNorm2d (training mode: biased stats over B*H*W), two-pass f32, + ReLU ----
    inv_n = 1.0 / num_valid
    mean = jnp.sum(y, axis=1, keepdims=True) * inv_n      # padded lanes of y are exactly 0
    centered = y - mean
    if Np != num_valid:
        tc = pad * ksize + pad                            # center-tap mask == lane validity
        centered = centered * masks[tc:tc + 1, :]
    var = jnp.sum(centered * centered, axis=1, keepdims=True) * inv_n
    scale = jax.lax.rsqrt(var + eps) * gamma_ref[...]
    shift = beta_ref[...] - mean * scale
    o_ref[...] = jnp.maximum(y * scale + shift, 0.0).astype(o_ref.dtype)


def _coord_patches_and_masks(H, W, KH, KW, pad):
    """Batch-independent numpy constants: shifted/masked coord patches + per-tap masks."""
    HW = H * W
    hh, ww = np.meshgrid(np.arange(H), np.arange(W), indexing="ij")
    h = hh.reshape(HW)
    w = ww.reshape(HW)
    # torch.linspace(-1, 1, n); channel order is [x (width), y (height)]
    xs = np.linspace(-1.0, 1.0, W, dtype=np.float32)
    ys = np.linspace(-1.0, 1.0, H, dtype=np.float32)
    xx = xs[w]
    yy = ys[h]
    cpat = np.zeros((KH * KW * 2, HW), np.float32)
    masks = np.zeros((KH * KW, HW), np.float32)
    for kh in range(KH):
        for kw in range(KW):
            t = kh * KW + kw
            dh, dw = kh - pad, kw - pad
            valid = (h + dh >= 0) & (h + dh < H) & (w + dw >= 0) & (w + dw < W)
            masks[t] = valid
            d = dh * W + dw
            cpat[2 * t + 0] = np.where(valid, np.roll(xx, -d), 0.0)
            cpat[2 * t + 1] = np.where(valid, np.roll(yy, -d), 0.0)
    return cpat, masks


def coord_conv_forward(x_nchw, weight_oihw, gamma, beta, *, padding=1, eps=1e-5,
                       matmul_dtype=jnp.float32):
    """CoordConv forward.  x_nchw: (B, Cin, H, W); weight_oihw: (Cout, Cin+2, KH, KW)."""
    B, C, H, W = x_nchw.shape
    Cout, Cin_w, KH, KW = weight_oihw.shape
    assert Cin_w == C + 2
    assert KH == KW and KH == 2 * padding + 1, "kernel assumes stride-1 'same' convolution"
    HW = H * W
    N = B * HW
    Np = ((N + 127) // 128) * 128          # keep the lane axis unmasked-dense

    # Stack batch onto the lane axis: lane index = b*HW + h*W + w.  (tiny layout pass)
    x2 = jnp.transpose(x_nchw, (1, 0, 2, 3)).reshape(C, N).astype(jnp.float32)

    # Weight re-layouts (KB-scale) and precomputed coord-channel bias map (Cout, HW).
    wm = jnp.transpose(weight_oihw[:, :C], (0, 2, 3, 1)).reshape(Cout, KH * KW * C)
    wc = jnp.transpose(weight_oihw[:, C:], (0, 2, 3, 1)).reshape(Cout, KH * KW * 2)
    cpat, masks = _coord_patches_and_masks(H, W, KH, KW, padding)
    bias = jnp.tile(wc.astype(jnp.float32) @ jnp.asarray(cpat), (1, B))   # (Cout, N)
    masks_t = np.tile(masks, (1, B))                                      # (9, N)

    if Np != N:
        x2 = jnp.pad(x2, ((0, 0), (0, Np - N)))
        bias = jnp.pad(bias, ((0, 0), (0, Np - N)))
        masks_t = np.pad(masks_t, ((0, 0), (0, Np - N)))
    masks_j = jnp.asarray(masks_t, jnp.float32)

    g2 = gamma.reshape(Cout, 1).astype(jnp.float32)
    b2 = beta.reshape(Cout, 1).astype(jnp.float32)

    kernel = partial(_coordconv_kernel, width=W, ksize=KH, pad=padding, eps=eps,
                     num_valid=N, matmul_dtype=matmul_dtype)

    out2 = pl.pallas_call(
        kernel,
        out_shape=jax.ShapeDtypeStruct((Cout, Np), jnp.float32),
        grid=(1,),
        in_specs=[
            pl.BlockSpec((C, Np), lambda i: (0, 0)),
            pl.BlockSpec((Cout, KH * KW * C), lambda i: (0, 0)),
            pl.BlockSpec((Cout, Np), lambda i: (0, 0)),
            pl.BlockSpec((KH * KW, Np), lambda i: (0, 0)),
            pl.BlockSpec((Cout, 1), lambda i: (0, 0)),
            pl.BlockSpec((Cout, 1), lambda i: (0, 0)),
        ],
        out_specs=pl.BlockSpec((Cout, Np), lambda i: (0, 0)),
        scratch_shapes=[pltpu.VMEM((KH * KW * C, Np), jnp.float32)],
        compiler_params=pltpu.CompilerParams(dimension_semantics=("arbitrary",)),
    )(x2, wm, bias, masks_j, g2, b2)

    # Back to NCHW (only a tiny layout pass on the output).
    return out2[:, :N].reshape(Cout, B, H, W).transpose(1, 0, 2, 3)


def _reference(x, weight, gamma, beta, eps=1e-5):
    """Pure-JAX reference (lax conv + training-mode BN + ReLU), NCHW."""
    B, C, H, W = x.shape
    xr = jnp.linspace(-1.0, 1.0, W, dtype=x.dtype)
    yr = jnp.linspace(-1.0, 1.0, H, dtype=x.dtype)
    yy, xx = jnp.meshgrid(yr, xr, indexing="ij")
    xx = jnp.broadcast_to(xx[None, None], (B, 1, H, W))
    yy = jnp.broadcast_to(yy[None, None], (B, 1, H, W))
    xa = jnp.concatenate([x, xx, yy], axis=1)
    y = jax.lax.conv_general_dilated(
        xa, weight, window_strides=(1, 1), padding=((1, 1), (1, 1)),
        dimension_numbers=("NCHW", "OIHW", "NCHW"))
    mean = y.mean(axis=(0, 2, 3), keepdims=True)
    var = ((y - mean) ** 2).mean(axis=(0, 2, 3), keepdims=True)
    yn = (y - mean) * jax.lax.rsqrt(var + eps)
    yn = yn * gamma[None, :, None, None] + beta[None, :, None, None]
    return jnp.maximum(yn, 0.0)


if __name__ == "__main__":
    key = jax.random.PRNGKey(0)
    k1, k2, k3, k4 = jax.random.split(key, 4)

    B, Cin, H, W = 2, 4, 16, 16
    Cout = 8

    x = jax.random.normal(k1, (B, Cin, H, W), jnp.float32)
    # Conv2d(in_channels + 2, out_channels, 3, 1, 1, bias=False) -> weight (Cout, Cin+2, 3, 3)
    weight = 0.1 * jax.random.normal(k2, (Cout, Cin + 2, 3, 3), jnp.float32)
    # BatchNorm2d(out_channels) affine params (running stats unused in training-mode forward)
    gamma = 1.0 + 0.1 * jax.random.normal(k3, (Cout,), jnp.float32)
    beta = 0.1 * jax.random.normal(k4, (Cout,), jnp.float32)

    ref = _reference(x, weight, gamma, beta)

    # Exact-semantics f32 path.
    out = jax.block_until_ready(coord_conv_forward(x, weight, gamma, beta))
    assert out.shape == (B, Cout, H, W)
    assert jnp.allclose(out, ref, atol=1e-4, rtol=1e-4)

    # bf16 MXU path (v6e/v7x preferred); looser tolerance from bf16 mantissa.
    out_bf = jax.block_until_ready(
        coord_conv_forward(x, weight, gamma, beta, matmul_dtype=jnp.bfloat16))
    assert jnp.allclose(out_bf, ref, atol=5e-2, rtol=5e-2)

    print("KERNEL_OK")
</pallas_src>

<mosaic_0001>
module attributes {stable_mosaic.version = 11 : i64} {
  func.func @_coordconv_kernel(%arg0: i32, %arg1: memref<4x512xf32, #tpu.memory_space<vmem>>, %arg2: memref<8x36xf32, #tpu.memory_space<vmem>>, %arg3: memref<8x512xf32, #tpu.memory_space<vmem>>, %arg4: memref<9x512xf32, #tpu.memory_space<vmem>>, %arg5: memref<8x1xf32, #tpu.memory_space<vmem>>, %arg6: memref<8x1xf32, #tpu.memory_space<vmem>>, %arg7: memref<8x512xf32, #tpu.memory_space<vmem>>, %arg8: memref<36x512xf32, #tpu.memory_space<vmem>>) attributes {dimension_semantics = [#tpu.dimension_semantics<arbitrary>], iteration_bounds = array<i64: 1>, scalar_prefetch = 0 : i64, scratch_operands = 1 : i64, tpu.core_type = #tpu.core_type<tc>, window_params = [{pipeline_mode = #tpu.pipeline_mode<synchronous>, transform_indices = @transform_0, window_bounds = array<i64: 4, 512>}, {pipeline_mode = #tpu.pipeline_mode<synchronous>, transform_indices = @transform_1, window_bounds = array<i64: 8, 36>}, {pipeline_mode = #tpu.pipeline_mode<synchronous>, transform_indices = @transform_2, window_bounds = array<i64: 8, 512>}, {pipeline_mode = #tpu.pipeline_mode<synchronous>, transform_indices = @transform_3, window_bounds = array<i64: 9, 512>}, {pipeline_mode = #tpu.pipeline_mode<synchronous>, transform_indices = @transform_4, window_bounds = array<i64: 8, 1>}, {pipeline_mode = #tpu.pipeline_mode<synchronous>, transform_indices = @transform_5, window_bounds = array<i64: 8, 1>}, {pipeline_mode = #tpu.pipeline_mode<synchronous>, transform_indices = @transform_6, window_bounds = array<i64: 8, 512>}]} {
    %c0 = arith.constant 0 : index
    %c0_0 = arith.constant 0 : index
    %0 = vector.load %arg1[%c0, %c0_0] : memref<4x512xf32, #tpu.memory_space<vmem>>, vector<4x512xf32>
    %c0_1 = arith.constant 0 : index
    %c0_2 = arith.constant 0 : index
    %1 = vector.load %arg4[%c0_1, %c0_2] : memref<9x512xf32, #tpu.memory_space<vmem>>, vector<9x512xf32>
    %c17_i32 = arith.constant 17 : i32
    %2 = tpu.dynamic_rotate %0 by %c17_i32 dim 1 : vector<4x512xf32>, i32 -> vector<4x512xf32>
    %3 = vector.extract_strided_slice %1 {offsets = [0, 0], sizes = [1, 512], strides = [1, 1]} : vector<9x512xf32> to vector<1x512xf32>
    %4 = vector.broadcast %3 : vector<1x512xf32> to vector<4x512xf32>
    %5 = arith.mulf %2, %4 : vector<4x512xf32>
    %c0_3 = arith.constant 0 : index
    %c0_4 = arith.constant 0 : index
    %6 = vector.load %arg8[%c0_3, %c0_4] : memref<36x512xf32, #tpu.memory_space<vmem>>, vector<4x512xf32>
    tpu.vector_store %arg8[%c0_3, %c0_4], %5 {strides = array<i32>} : memref<36x512xf32, #tpu.memory_space<vmem>>, vector<4x512xf32>,
    %c16_i32 = arith.constant 16 : i32
    %7 = tpu.dynamic_rotate %0 by %c16_i32 dim 1 : vector<4x512xf32>, i32 -> vector<4x512xf32>
    %8 = vector.extract_strided_slice %1 {offsets = [1, 0], sizes = [1, 512], strides = [1, 1]} : vector<9x512xf32> to vector<1x512xf32>
    %9 = vector.broadcast %8 : vector<1x512xf32> to vector<4x512xf32>
    %10 = arith.mulf %7, %9 : vector<4x512xf32>
    %c4 = arith.constant 4 : index
    %c0_5 = arith.constant 0 : index
    %11 = vector.load %arg8[%c4, %c0_5] : memref<36x512xf32, #tpu.memory_space<vmem>>, vector<4x512xf32>
    tpu.vector_store %arg8[%c4, %c0_5], %10 {strides = array<i32>} : memref<36x512xf32, #tpu.memory_space<vmem>>, vector<4x512xf32>,
    %c15_i32 = arith.constant 15 : i32
    %12 = tpu.dynamic_rotate %0 by %c15_i32 dim 1 : vector<4x512xf32>, i32 -> vector<4x512xf32>
    %13 = vector.extract_strided_slice %1 {offsets = [2, 0], sizes = [1, 512], strides = [1, 1]} : vector<9x512xf32> to vector<1x512xf32>
    %14 = vector.broadcast %13 : vector<1x512xf32> to vector<4x512xf32>
    %15 = arith.mulf %12, %14 : vector<4x512xf32>
    %c8 = arith.constant 8 : index
    %c0_6 = arith.constant 0 : index
    %16 = vector.load %arg8[%c8, %c0_6] : memref<36x512xf32, #tpu.memory_space<vmem>>, vector<4x512xf32>
    tpu.vector_store %arg8[%c8, %c0_6], %15 {strides = array<i32>} : memref<36x512xf32, #tpu.memory_space<vmem>>, vector<4x512xf32>,
    %c1_i32 = arith.constant 1 : i32
    %17 = tpu.dynamic_rotate %0 by %c1_i32 dim 1 : vector<4x512xf32>, i32 -> vector<4x512xf32>
    %18 = vector.extract_strided_slice %1 {offsets = [3, 0], sizes = [1, 512], strides = [1, 1]} : vector<9x512xf32> to vector<1x512xf32>
    %19 = vector.broadcast %18 : vector<1x512xf32> to vector<4x512xf32>
    %20 = arith.mulf %17, %19 : vector<4x512xf32>
    %c12 = arith.constant 12 : index
    %c0_7 = arith.constant 0 : index
    %21 = vector.load %arg8[%c12, %c0_7] : memref<36x512xf32, #tpu.memory_space<vmem>>, vector<4x512xf32>
    tpu.vector_store %arg8[%c12, %c0_7], %20 {strides = array<i32>} : memref<36x512xf32, #tpu.memory_space<vmem>>, vector<4x512xf32>,
    %c16 = arith.constant 16 : index
    %c0_8 = arith.constant 0 : index
    %22 = vector.load %arg8[%c16, %c0_8] : memref<36x512xf32, #tpu.memory_space<vmem>>, vector<4x512xf32>
    tpu.vector_store %arg8[%c16, %c0_8], %0 {strides = array<i32>} : memref<36x512xf32, #tpu.memory_space<vmem>>, vector<4x512xf32>,
    %c511_i32 = arith.constant 511 : i32
    %23 = tpu.dynamic_rotate %0 by %c511_i32 dim 1 : vector<4x512xf32>, i32 -> vector<4x512xf32>
    %24 = vector.extract_strided_slice %1 {offsets = [5, 0], sizes = [1, 512], strides = [1, 1]} : vector<9x512xf32> to vector<1x512xf32>
    %25 = vector.broadcast %24 : vector<1x512xf32> to vector<4x512xf32>
    %26 = arith.mulf %23, %25 : vector<4x512xf32>
    %c20 = arith.constant 20 : index
    %c0_9 = arith.constant 0 : index
    %27 = vector.load %arg8[%c20, %c0_9] : memref<36x512xf32, #tpu.memory_space<vmem>>, vector<4x512xf32>
    tpu.vector_store %arg8[%c20, %c0_9], %26 {strides = array<i32>} : memref<36x512xf32, #tpu.memory_space<vmem>>, vector<4x512xf32>,
    %c497_i32 = arith.constant 497 : i32
    %28 = tpu.dynamic_rotate %0 by %c497_i32 dim 1 : vector<4x512xf32>, i32 -> vector<4x512xf32>
    %29 = vector.extract_strided_slice %1 {offsets = [6, 0], sizes = [1, 512], strides = [1, 1]} : vector<9x512xf32> to vector<1x512xf32>
    %30 = vector.broadcast %29 : vector<1x512xf32> to vector<4x512xf32>
    %31 = arith.mulf %28, %30 : vector<4x512xf32>
    %c24 = arith.constant 24 : index
    %c0_10 = arith.constant 0 : index
    %32 = vector.load %arg8[%c24, %c0_10] : memref<36x512xf32, #tpu.memory_space<vmem>>, vector<4x512xf32>
    tpu.vector_store %arg8[%c24, %c0_10], %31 {strides = array<i32>} : memref<36x512xf32, #tpu.memory_space<vmem>>, vector<4x512xf32>,
    %c496_i32 = arith.constant 496 : i32
    %33 = tpu.dynamic_rotate %0 by %c496_i32 dim 1 : vector<4x512xf32>, i32 -> vector<4x512xf32>
    %34 = vector.extract_strided_slice %1 {offsets = [7, 0], sizes = [1, 512], strides = [1, 1]} : vector<9x512xf32> to vector<1x512xf32>
    %35 = vector.broadcast %34 : vector<1x512xf32> to vector<4x512xf32>
    %36 = arith.mulf %33, %35 : vector<4x512xf32>
    %c28 = arith.constant 28 : index
    %c0_11 = arith.constant 0 : index
    %37 = vector.load %arg8[%c28, %c0_11] : memref<36x512xf32, #tpu.memory_space<vmem>>, vector<4x512xf32>
    tpu.vector_store %arg8[%c28, %c0_11], %36 {strides = array<i32>} : memref<36x512xf32, #tpu.memory_space<vmem>>, vector<4x512xf32>,
    %c495_i32 = arith.constant 495 : i32
    %38 = tpu.dynamic_rotate %0 by %c495_i32 dim 1 : vector<4x512xf32>, i32 -> vector<4x512xf32>
    %39 = vector.extract_strided_slice %1 {offsets = [8, 0], sizes = [1, 512], strides = [1, 1]} : vector<9x512xf32> to vector<1x512xf32>
    %40 = vector.broadcast %39 : vector<1x512xf32> to vector<4x512xf32>
    %41 = arith.mulf %38, %40 : vector<4x512xf32>
    %c32 = arith.constant 32 : index
    %c0_12 = arith.constant 0 : index
    %42 = vector.load %arg8[%c32, %c0_12] : memref<36x512xf32, #tpu.memory_space<vmem>>, vector<4x512xf32>
    tpu.vector_store %arg8[%c32, %c0_12], %41 {strides = array<i32>} : memref<36x512xf32, #tpu.memory_space<vmem>>, vector<4x512xf32>,
    %c0_13 = arith.constant 0 : index
    %c0_14 = arith.constant 0 : index
    %43 = vector.load %arg8[%c0_13, %c0_14] : memref<36x512xf32, #tpu.memory_space<vmem>>, vector<36x512xf32>
    %c0_15 = arith.constant 0 : index
    %c0_16 = arith.constant 0 : index
    %44 = vector.load %arg2[%c0_15, %c0_16] : memref<8x36xf32, #tpu.memory_space<vmem>>, vector<8x36xf32>
    %cst = arith.constant dense<0.000000e+00> : vector<8x512xf32>
    %45 = tpu.matmul %44, %43, %cst {dimension_numbers = #tpu.dot_dimension_numbers<[1], [0], [0], [1], [0, 0, 1, 1], [], []>} : vector<8x36xf32>, vector<36x512xf32>, vector<8x512xf32> -> vector<8x512xf32>
    %c0_17 = arith.constant 0 : index
    %c0_18 = arith.constant 0 : index
    %46 = vector.load %arg3[%c0_17, %c0_18] : memref<8x512xf32, #tpu.memory_space<vmem>>, vector<8x512xf32>
    %47 = arith.addf %45, %46 : vector<8x512xf32>
    %cst_19 = arith.constant dense<0.000000e+00> : vector<8xf32>
    %48 = vector.multi_reduction <add>, %47, %cst_19 [1] : vector<8x512xf32> to vector<8xf32>
    %49 = vector.shape_cast %48 : vector<8xf32> to vector<8x1xf32>
    %cst_20 = arith.constant 0.001953125 : f32
    %50 = vector.broadcast %cst_20 : f32 to vector<8x1xf32>
    %51 = arith.mulf %49, %50 : vector<8x1xf32>
    %52 = vector.broadcast %51 : vector<8x1xf32> to vector<8x512xf32>
    %53 = arith.subf %47, %52 : vector<8x512xf32>
    %54 = arith.mulf %53, %53 : vector<8x512xf32>
    %cst_21 = arith.constant dense<0.000000e+00> : vector<8xf32>
    %55 = vector.multi_reduction <add>, %54, %cst_21 [1] : vector<8x512xf32> to vector<8xf32>
    %56 = vector.shape_cast %55 : vector<8xf32> to vector<8x1xf32>
    %cst_22 = arith.constant 0.001953125 : f32
    %57 = vector.broadcast %cst_22 : f32 to vector<8x1xf32>
    %58 = arith.mulf %56, %57 : vector<8x1xf32>
    %cst_23 = arith.constant 9.99999974E-6 : f32
    %59 = vector.broadcast %cst_23 : f32 to vector<8x1xf32>
    %60 = arith.addf %58, %59 : vector<8x1xf32>
    %61 = math.rsqrt %60 : vector<8x1xf32>
    %c0_24 = arith.constant 0 : index
    %c0_25 = arith.constant 0 : index
    %62 = vector.load %arg5[%c0_24, %c0_25] : memref<8x1xf32, #tpu.memory_space<vmem>>, vector<8x1xf32>
    %63 = arith.mulf %61, %62 : vector<8x1xf32>
    %c0_26 = arith.constant 0 : index
    %c0_27 = arith.constant 0 : index
    %64 = vector.load %arg6[%c0_26, %c0_27] : memref<8x1xf32, #tpu.memory_space<vmem>>, vector<8x1xf32>
    %65 = arith.mulf %51, %63 : vector<8x1xf32>
    %66 = arith.subf %64, %65 : vector<8x1xf32>
    %67 = vector.broadcast %63 : vector<8x1xf32> to vector<8x512xf32>
    %68 = arith.mulf %47, %67 : vector<8x512xf32>
    %69 = vector.broadcast %66 : vector<8x1xf32> to vector<8x512xf32>
    %70 = arith.addf %68, %69 : vector<8x512xf32>
    %cst_28 = arith.constant 0.000000e+00 : f32
    %71 = vector.broadcast %cst_28 : f32 to vector<8x512xf32>
    %72 = arith.maximumf %70, %71 : vector<8x512xf32>
    %c0_29 = arith.constant 0 : index
    %c0_30 = arith.constant 0 : index
    %73 = vector.load %arg7[%c0_29, %c0_30] : memref<8x512xf32, #tpu.memory_space<vmem>>, vector<8x512xf32>
    tpu.vector_store %arg7[%c0_29, %c0_30], %72 {strides = array<i32>} : memref<8x512xf32, #tpu.memory_space<vmem>>, vector<8x512xf32>,
    return
  }
  func.func @transform_0(%arg0: i32) -> (i32, i32) {
    %c0_i32 = arith.constant 0 : i32
    %c0_i32_0 = arith.constant 0 : i32
    %c0_i32_1 = arith.constant 0 : i32
    return %c0_i32, %c0_i32_0 : i32, i32
  }
  func.func @transform_1(%arg0: i32) -> (i32, i32) {
    %c0_i32 = arith.constant 0 : i32
    %c0_i32_0 = arith.constant 0 : i32
    %c0_i32_1 = arith.constant 0 : i32
    return %c0_i32, %c0_i32_0 : i32, i32
  }
  func.func @transform_2(%arg0: i32) -> (i32, i32) {
    %c0_i32 = arith.constant 0 : i32
    %c0_i32_0 = arith.constant 0 : i32
    %c0_i32_1 = arith.constant 0 : i32
    return %c0_i32, %c0_i32_0 : i32, i32
  }
  func.func @transform_3(%arg0: i32) -> (i32, i32) {
    %c0_i32 = arith.constant 0 : i32
    %c0_i32_0 = arith.constant 0 : i32
    %c0_i32_1 = arith.constant 0 : i32
    return %c0_i32, %c0_i32_0 : i32, i32
  }
  func.func @transform_4(%arg0: i32) -> (i32, i32) {
    %c0_i32 = arith.constant 0 : i32
    %c0_i32_0 = arith.constant 0 : i32
    %c0_i32_1 = arith.constant 0 : i32
    return %c0_i32, %c0_i32_0 : i32, i32
  }
  func.func @transform_5(%arg0: i32) -> (i32, i32) {
    %c0_i32 = arith.constant 0 : i32
    %c0_i32_0 = arith.constant 0 : i32
    %c0_i32_1 = arith.constant 0 : i32
    return %c0_i32, %c0_i32_0 : i32, i32
  }
  func.func @transform_6(%arg0: i32) -> (i32, i32) {
    %c0_i32 = arith.constant 0 : i32
    %c0_i32_0 = arith.constant 0 : i32
    %c0_i32_1 = arith.constant 0 : i32
    return %c0_i32, %c0_i32_0 : i32, i32
  }
}

</mosaic_0001>

<llo_original>
// kernel: tpu_custom_call.1
$region0: #{tpu_custom_call.1}
  #allocation0 [shape = 'u32[]', space=smem, size = 0x4, offset = 0x4, fixed_abs, tag = 'smem constant byte address 0x4 - core index']
  #allocation1 [shape = 'u32[144,128]{1,0:T(1,128)}', space=vmem, size = 0x12000, scoped, tag = 'internal scratch']
  #allocation2 [shape = 'f32[36,512]{1,0:T(8,128)}', space=vmem, size = 0x14000, scoped, tag = 'scratch operand']
  %s0 = inlined_call_operand.vmem [shape: f32[4,512], index: 0, kind: input, shape index: {}]
  %s1 = inlined_call_operand.hbm [shape: f32[8,36], index: 1, kind: input, shape index: {}]
  %s2 = inlined_call_operand.hbm [shape: f32[8,512], index: 2, kind: input, shape index: {}]
  %s3 = inlined_call_operand.hbm [shape: f32[9,512], index: 3, kind: input, shape index: {}]
  %s4 = inlined_call_operand.vmem [shape: f32[8,1], index: 4, kind: input, shape index: {}]
  %s5 = inlined_call_operand.vmem [shape: f32[8,1], index: 5, kind: input, shape index: {}]
  %s6 = inlined_call_operand.hbm [shape: f32[8,512], index: 6, kind: output, shape index: {}]
  %s7 = sld [smem:[#allocation0]]
  $region46: #{tpu_custom_call.1} parent=0
    _
  %s9 = ssub.s32 1, %s7
  %s10 = scalar_select 0, %s9, %s7
  $region1: #{tpu_custom_call.1} parent=0
    #allocation3 [shape = 'u8[4096]{0}', space=vmem, size = 0x1000, scoped, tag = 'input window, operand 1, single buffered']
    #allocation4 [shape = 's32[1]{0}', space=sflag, size = 0x4, scoped, tag = 'scoped memory for tpu_custom_call.1']
    #allocation5 [shape = 's32[1]{0}', space=sflag, size = 0x4, scoped, tag = 'scoped memory for tpu_custom_call.1']
    #allocation6 [shape = 'u8[16384]{0}', space=vmem, size = 0x4000, scoped, tag = 'input window, operand 2, single buffered']
    #allocation7 [shape = 's32[1]{0}', space=sflag, size = 0x4, scoped, tag = 'scoped memory for tpu_custom_call.1']
    #allocation8 [shape = 'u8[32768]{0}', space=vmem, size = 0x8000, scoped, tag = 'input window, operand 3, single buffered']
    #allocation9 [shape = 'u8[16384]{0}', space=vmem, size = 0x4000, scoped, tag = 'output window, operand 0, single buffered']
    %11 = vsyncpa [#allocation4], 0
    %12 = vsyncpa [#allocation7], 0
    %13 = vsyncpa [#allocation5], 0
    // Predicated region
    $region2: #{tpu_custom_call.1} parent=1 // pred_check
      _
    $region3: #{tpu_custom_call.1} parent=1 // pred_check_branch
      %15 = sbr.rel (0) target = $region5
    $region4: #{tpu_custom_call.1} parent=1 // pred_region
      _
    $region5: #{tpu_custom_call.1} parent=1 // pred_fallthru
      _
    // Predicated region
    $region6: #{tpu_custom_call.1} parent=1 // pred_check
      _
    $region7: #{tpu_custom_call.1} parent=1 // pred_check_branch
      %17 = sbr.rel (0) target = $region9
    $region8: #{tpu_custom_call.1} parent=1 // pred_region
      %s19 = ssub.s32 128, 128
      %20 = vsyncadd [#allocation4], %s19
      %s22 = sshll.u32 [#allocation3], 4
      %s23 = int_to_ptr.vmem [resolvable:$true] %s22
      %25 = dma.hbm_to_vmem [thread:$0]  %s1, 128, %s23, [#allocation4]
    $region9: #{tpu_custom_call.1} parent=1 // pred_fallthru
      _
    // Predicated region
    $region10: #{tpu_custom_call.1} parent=1 // pred_check
      _
    $region11: #{tpu_custom_call.1} parent=1 // pred_check_branch
      %27 = sbr.rel (0) target = $region13
    $region12: #{tpu_custom_call.1} parent=1 // pred_region
      %s29 = ssub.s32 512, 512
      %30 = vsyncadd [#allocation7], %s29
      %s32 = sshll.u32 [#allocation6], 4
      %s33 = int_to_ptr.vmem [resolvable:$true] %s32
      %35 = dma.hbm_to_vmem [thread:$0]  %s2, 512, %s33, [#allocation7]
    $region13: #{tpu_custom_call.1} parent=1 // pred_fallthru
      _
    // Predicated region
    $region14: #{tpu_custom_call.1} parent=1 // pred_check
      _
    $region15: #{tpu_custom_call.1} parent=1 // pred_check_branch
      %37 = sbr.rel (0) target = $region17
    $region16: #{tpu_custom_call.1} parent=1 // pred_region
      %s39 = ssub.s32 1024, 1024
      %40 = vsyncadd [#allocation7], %s39
      %s41 = sshll.u32 [#allocation8], 4
      %s42 = int_to_ptr.vmem [resolvable:$true] %s41
      %47 = dma.hbm_to_vmem [thread:$0]  %s3, 1024, %s42, [#allocation7], 512, 512, 32
    $region17: #{tpu_custom_call.1} parent=1 // pred_fallthru
      _
    // Predicated region
    $region18: #{tpu_custom_call.1} parent=1 // pred_check
      _
    $region19: #{tpu_custom_call.1} parent=1 // pred_check_branch
      %49 = sbr.rel (0) target = $region21
    $region20: #{tpu_custom_call.1} parent=1 // pred_region
      _
    $region21: #{tpu_custom_call.1} parent=1 // pred_fallthru
      _
    // Predicated region
    $region22: #{tpu_custom_call.1} parent=1 // pred_check
      _
    $region23: #{tpu_custom_call.1} parent=1 // pred_check_branch
      %51 = sbr.rel (0) target = $region25
    $region24: #{tpu_custom_call.1} parent=1 // pred_region
      _
    $region25: #{tpu_custom_call.1} parent=1 // pred_fallthru
      _
    // Predicated region
    $region26: #{tpu_custom_call.1} parent=1 // pred_check
      _
    $region27: #{tpu_custom_call.1} parent=1 // pred_check_branch
      %53 = sbr.rel (0) target = $region29
    $region28: #{tpu_custom_call.1} parent=1 // pred_region
      %54 = dma.done [#allocation4], 128
    $region29: #{tpu_custom_call.1} parent=1 // pred_fallthru
      _
    // Predicated region
    $region30: #{tpu_custom_call.1} parent=1 // pred_check
      _
    $region31: #{tpu_custom_call.1} parent=1 // pred_check_branch
      %56 = sbr.rel (0) target = $region33
    $region32: #{tpu_custom_call.1} parent=1 // pred_region
      %57 = dma.done [#allocation7], 512
    $region33: #{tpu_custom_call.1} parent=1 // pred_fallthru
      _
    // Predicated region
    $region34: #{tpu_custom_call.1} parent=1 // pred_check
      _
    $region35: #{tpu_custom_call.1} parent=1 // pred_check_branch
      %59 = sbr.rel (0) target = $region37
    $region36: #{tpu_custom_call.1} parent=1 // pred_region
      %60 = dma.done [#allocation7], 1024
    $region37: #{tpu_custom_call.1} parent=1 // pred_fallthru
      _
    %v61 = vld [vmem:[%s0] sm:$0xff]
    %v62 = vld [vmem:[%s0 + $0x8] sm:$0xff]
    %v63 = vld [vmem:[#allocation8] sm:$0xff]
    %v64 = vld [vmem:[#allocation8 + $0x8] sm:$0xff]
    %v65 = vld [vmem:[#allocation8 + $0x10] sm:$0xff]
    %v66 = vld [vmem:[#allocation8 + $0x18] sm:$0xff]
    %v67 = vld [vmem:[#allocation8 + $0x20] sm:$0x1]
    %v68 = vld [vmem:[#allocation8 + $0x28] sm:$0x1]
    %v69 = vld [vmem:[#allocation8 + $0x30] sm:$0x1]
    %v70 = vld [vmem:[#allocation8 + $0x38] sm:$0x1]
    %v73 = vcombine.high %v61, %v61
    %v74 = vcombine.high %v62, %v62
    %77 = vrot.lane.b32.xlu0 %v61, 17
    %v78 = vpop.permute.xlu0 %77
    %79 = vrot.lane.b32.xlu0 %v73, 17
    %v80 = vpop.permute.xlu0 %79
    %81 = vrot.lane.b32.xlu0 %v62, 17
    %v82 = vpop.permute.xlu0 %81
    %83 = vrot.lane.b32.xlu0 %v74, 17
    %v84 = vpop.permute.xlu0 %83
    %v85 = vlaneseq
    %v86 = vand.u32 %v85, 127
    %vm87 = vcmp.lt.s32.totalorder %v86, 17
    %v88 = vsel %vm87, %v82, %v84
    %v89 = vsel %vm87, %v80, %v82
    %v90 = vsel %vm87, %v78, %v80
    %v91 = vsel %vm87, %v84, %v78
    %v92 = vlaneseq
    %v93 = vshrl.u32 %v92, 7
    %v94 = vsub.s32 0, %v93
    %v95 = vrot.slane %v63, %v94
    %v96 = vlaneseq
    %v97 = vshrl.u32 %v96, 7
    %v98 = vsub.s32 0, %v97
    %v99 = vrot.slane %v64, %v98
    %v100 = vlaneseq
    %v101 = vshrl.u32 %v100, 7
    %v102 = vsub.s32 0, %v101
    %v103 = vrot.slane %v65, %v102
    %v104 = vlaneseq
    %v105 = vshrl.u32 %v104, 7
    %v106 = vsub.s32 0, %v105
    %v107 = vrot.slane %v66, %v106
    %v108 = vmul.f32 %v91, %v95
    %v109 = vmul.f32 %v90, %v99
    %v110 = vmul.f32 %v89, %v103
    %v111 = vmul.f32 %v88, %v107
    %112 = vst [vmem:[#allocation2] sm:$0xf] %v108
    %113 = vst [vmem:[#allocation2 + $0x8] sm:$0xf] %v109
    %114 = vst [vmem:[#allocation2 + $0x10] sm:$0xf] %v110
    %115 = vst [vmem:[#allocation2 + $0x18] sm:$0xf] %v111
    %116 = vrot.lane.b32.xlu0 %v61, 16
    %v117 = vpop.permute.xlu0 %116
    %118 = vrot.lane.b32.xlu0 %v73, 16
    %v119 = vpop.permute.xlu0 %118
    %120 = vrot.lane.b32.xlu0 %v62, 16
    %v121 = vpop.permute.xlu0 %120
    %122 = vrot.lane.b32.xlu0 %v74, 16
    %v123 = vpop.permute.xlu0 %122
    %vm124 = vcmp.lt.s32.totalorder %v86, 16
    %v125 = vsel %vm124, %v121, %v123
    %v126 = vsel %vm124, %v119, %v121
    %v127 = vsel %vm124, %v117, %v119
    %v128 = vsel %vm124, %v123, %v117
    %v129 = vlaneseq
    %v130 = vshrl.u32 %v129, 7
    %v131 = vsub.s32 1, %v130
    %v132 = vrot.slane %v63, %v131
    %v133 = vlaneseq
    %v134 = vshrl.u32 %v133, 7
    %v135 = vsub.s32 1, %v134
    %v136 = vrot.slane %v64, %v135
    %v137 = vlaneseq
    %v138 = vshrl.u32 %v137, 7
    %v139 = vsub.s32 1, %v138
    %v140 = vrot.slane %v65, %v139
    %v141 = vlaneseq
    %v142 = vshrl.u32 %v141, 7
    %v143 = vsub.s32 1, %v142
    %v144 = vrot.slane %v66, %v143
    %v145 = vmul.f32 %v128, %v132
    %v146 = vmul.f32 %v127, %v136
    %v147 = vmul.f32 %v126, %v140
    %v148 = vmul.f32 %v125, %v144
    %v153 = vrot.slane %v145, 4
    %v154 = vrot.slane %v146, 4
    %v155 = vrot.slane %v147, 4
    %v156 = vrot.slane %v148, 4
    %161 = vst [vmem:[#allocation2] sm:$0xf0] %v153
    %162 = vst [vmem:[#allocation2 + $0x8] sm:$0xf0] %v154
    %163 = vst [vmem:[#allocation2 + $0x10] sm:$0xf0] %v155
    %164 = vst [vmem:[#allocation2 + $0x18] sm:$0xf0] %v156
    %165 = vrot.lane.b32.xlu0 %v61, 15
    %v166 = vpop.permute.xlu0 %165
    %167 = vrot.lane.b32.xlu0 %v73, 15
    %v168 = vpop.permute.xlu0 %167
    %169 = vrot.lane.b32.xlu0 %v62, 15
    %v170 = vpop.permute.xlu0 %169
    %171 = vrot.lane.b32.xlu0 %v74, 15
    %v172 = vpop.permute.xlu0 %171
    %vm173 = vcmp.lt.s32.totalorder %v86, 15
    %v174 = vsel %vm173, %v170, %v172
    %v175 = vsel %vm173, %v168, %v170
    %v176 = vsel %vm173, %v166, %v168
    %v177 = vsel %vm173, %v172, %v166
    %v178 = vlaneseq
    %v179 = vshrl.u32 %v178, 7
    %v180 = vsub.s32 2, %v179
    %v181 = vrot.slane %v63, %v180
    %v182 = vlaneseq
    %v183 = vshrl.u32 %v182, 7
    %v184 = vsub.s32 2, %v183
    %v185 = vrot.slane %v64, %v184
    %v186 = vlaneseq
    %v187 = vshrl.u32 %v186, 7
    %v188 = vsub.s32 2, %v187
    %v189 = vrot.slane %v65, %v188
    %v190 = vlaneseq
    %v191 = vshrl.u32 %v190, 7
    %v192 = vsub.s32 2, %v191
    %v193 = vrot.slane %v66, %v192
    %v194 = vmul.f32 %v177, %v181
    %v195 = vmul.f32 %v176, %v185
    %v196 = vmul.f32 %v175, %v189
    %v197 = vmul.f32 %v174, %v193
    %198 = vst [vmem:[#allocation2 + $0x20] sm:$0xf] %v194
    %199 = vst [vmem:[#allocation2 + $0x28] sm:$0xf] %v195
    %200 = vst [vmem:[#allocation2 + $0x30] sm:$0xf] %v196
    %201 = vst [vmem:[#allocation2 + $0x38] sm:$0xf] %v197
    %202 = vrot.lane.b32.xlu0 %v61, 1
    %v203 = vpop.permute.xlu0 %202
    %204 = vrot.lane.b32.xlu0 %v73, 1
    %v205 = vpop.permute.xlu0 %204
    %206 = vrot.lane.b32.xlu0 %v62, 1
    %v207 = vpop.permute.xlu0 %206
    %208 = vrot.lane.b32.xlu0 %v74, 1
    %v209 = vpop.permute.xlu0 %208
    %vm210 = vcmp.lt.s32.totalorder %v86, 1
    %v211 = vsel %vm210, %v207, %v209
    %v212 = vsel %vm210, %v205, %v207
    %v213 = vsel %vm210, %v203, %v205
    %v214 = vsel %vm210, %v209, %v203
    %v215 = vlaneseq
    %v216 = vshrl.u32 %v215, 7
    %v217 = vsub.s32 3, %v216
    %v218 = vrot.slane %v63, %v217
    %v219 = vlaneseq
    %v220 = vshrl.u32 %v219, 7
    %v221 = vsub.s32 3, %v220
    %v222 = vrot.slane %v64, %v221
    %v223 = vlaneseq
    %v224 = vshrl.u32 %v223, 7
    %v225 = vsub.s32 3, %v224
    %v226 = vrot.slane %v65, %v225
    %v227 = vlaneseq
    %v228 = vshrl.u32 %v227, 7
    %v229 = vsub.s32 3, %v228
    %v230 = vrot.slane %v66, %v229
    %v231 = vmul.f32 %v214, %v218
    %v232 = vmul.f32 %v213, %v222
    %v233 = vmul.f32 %v212, %v226
    %v234 = vmul.f32 %v211, %v230
    %v239 = vrot.slane %v231, 4
    %v240 = vrot.slane %v232, 4
    %v241 = vrot.slane %v233, 4
    %v242 = vrot.slane %v234, 4
    %247 = vst [vmem:[#allocation2 + $0x20] sm:$0xf0] %v239
    %248 = vst [vmem:[#allocation2 + $0x28] sm:$0xf0] %v240
    %249 = vst [vmem:[#allocation2 + $0x30] sm:$0xf0] %v241
    %250 = vst [vmem:[#allocation2 + $0x38] sm:$0xf0] %v242
    %251 = vst [vmem:[#allocation2 + $0x40] sm:$0xf] %v61
    %252 = vst [vmem:[#allocation2 + $0x48] sm:$0xf] %v73
    %253 = vst [vmem:[#allocation2 + $0x50] sm:$0xf] %v62
    %254 = vst [vmem:[#allocation2 + $0x58] sm:$0xf] %v74
    %255 = vrot.lane.b32.xlu0 %v61, 127
    %v256 = vpop.permute.xlu0 %255
    %257 = vrot.lane.b32.xlu0 %v73, 127
    %v258 = vpop.permute.xlu0 %257
    %259 = vrot.lane.b32.xlu0 %v62, 127
    %v260 = vpop.permute.xlu0 %259
    %261 = vrot.lane.b32.xlu0 %v74, 127
    %v262 = vpop.permute.xlu0 %261
    %vm263 = vcmp.lt.s32.totalorder %v86, 127
    %v264 = vsel %vm263, %v260, %v262
    %v265 = vsel %vm263, %v258, %v260
    %v266 = vsel %vm263, %v256, %v258
    %v267 = vsel %vm263, %v262, %v256
    %v268 = vlaneseq
    %v269 = vshrl.u32 %v268, 7
    %v270 = vsub.s32 5, %v269
    %v271 = vrot.slane %v63, %v270
    %v272 = vlaneseq
    %v273 = vshrl.u32 %v272, 7
    %v274 = vsub.s32 5, %v273
    %v275 = vrot.slane %v64, %v274
    %v276 = vlaneseq
    %v277 = vshrl.u32 %v276, 7
    %v278 = vsub.s32 5, %v277
    %v279 = vrot.slane %v65, %v278
    %v280 = vlaneseq
    %v281 = vshrl.u32 %v280, 7
    %v282 = vsub.s32 5, %v281
    %v283 = vrot.slane %v66, %v282
    %v284 = vmul.f32 %v266, %v271
    %v285 = vmul.f32 %v265, %v275
    %v286 = vmul.f32 %v264, %v279
    %v287 = vmul.f32 %v267, %v283
    %v292 = vrot.slane %v284, 4
    %v293 = vrot.slane %v285, 4
    %v294 = vrot.slane %v286, 4
    %v295 = vrot.slane %v287, 4
    %300 = vst [vmem:[#allocation2 + $0x40] sm:$0xf0] %v292
    %301 = vst [vmem:[#allocation2 + $0x48] sm:$0xf0] %v293
    %302 = vst [vmem:[#allocation2 + $0x50] sm:$0xf0] %v294
    %303 = vst [vmem:[#allocation2 + $0x58] sm:$0xf0] %v295
    %304 = vrot.lane.b32.xlu0 %v61, 113
    %v305 = vpop.permute.xlu0 %304
    %306 = vrot.lane.b32.xlu0 %v73, 113
    %v307 = vpop.permute.xlu0 %306
    %308 = vrot.lane.b32.xlu0 %v62, 113
    %v309 = vpop.permute.xlu0 %308
    %310 = vrot.lane.b32.xlu0 %v74, 113
    %v311 = vpop.permute.xlu0 %310
    %vm312 = vcmp.lt.s32.totalorder %v86, 113
    %v313 = vsel %vm312, %v309, %v311
    %v314 = vsel %vm312, %v307, %v309
    %v315 = vsel %vm312, %v305, %v307
    %v316 = vsel %vm312, %v311, %v305
    %v317 = vlaneseq
    %v318 = vshrl.u32 %v317, 7
    %v319 = vsub.s32 6, %v318
    %v320 = vrot.slane %v63, %v319
    %v321 = vlaneseq
    %v322 = vshrl.u32 %v321, 7
    %v323 = vsub.s32 6, %v322
    %v324 = vrot.slane %v64, %v323
    %v325 = vlaneseq
    %v326 = vshrl.u32 %v325, 7
    %v327 = vsub.s32 6, %v326
    %v328 = vrot.slane %v65, %v327
    %v329 = vlaneseq
    %v330 = vshrl.u32 %v329, 7
    %v331 = vsub.s32 6, %v330
    %v332 = vrot.slane %v66, %v331
    %v333 = vmul.f32 %v315, %v320
    %v334 = vmul.f32 %v314, %v324
    %v335 = vmul.f32 %v313, %v328
    %v336 = vmul.f32 %v316, %v332
    %337 = vst [vmem:[#allocation2 + $0x60] sm:$0xf] %v333
    %338 = vst [vmem:[#allocation2 + $0x68] sm:$0xf] %v334
    %339 = vst [vmem:[#allocation2 + $0x70] sm:$0xf] %v335
    %340 = vst [vmem:[#allocation2 + $0x78] sm:$0xf] %v336
    %341 = vrot.lane.b32.xlu0 %v61, 112
    %v342 = vpop.permute.xlu0 %341
    %343 = vrot.lane.b32.xlu0 %v73, 112
    %v344 = vpop.permute.xlu0 %343
    %345 = vrot.lane.b32.xlu0 %v62, 112
    %v346 = vpop.permute.xlu0 %345
    %347 = vrot.lane.b32.xlu0 %v74, 112
    %v348 = vpop.permute.xlu0 %347
    %vm349 = vcmp.lt.s32.totalorder %v86, 112
    %v350 = vsel %vm349, %v346, %v348
    %v351 = vsel %vm349, %v344, %v346
    %v352 = vsel %vm349, %v342, %v344
    %v353 = vsel %vm349, %v348, %v342
    %v354 = vlaneseq
    %v355 = vshrl.u32 %v354, 7
    %v356 = vsub.s32 7, %v355
    %v357 = vrot.slane %v63, %v356
    %v358 = vlaneseq
    %v359 = vshrl.u32 %v358, 7
    %v360 = vsub.s32 7, %v359
    %v361 = vrot.slane %v64, %v360
    %v362 = vlaneseq
    %v363 = vshrl.u32 %v362, 7
    %v364 = vsub.s32 7, %v363
    %v365 = vrot.slane %v65, %v364
    %v366 = vlaneseq
    %v367 = vshrl.u32 %v366, 7
    %v368 = vsub.s32 7, %v367
    %v369 = vrot.slane %v66, %v368
    %v370 = vmul.f32 %v352, %v357
    %v371 = vmul.f32 %v351, %v361
    %v372 = vmul.f32 %v350, %v365
    %v373 = vmul.f32 %v353, %v369
    %v378 = vrot.slane %v370, 4
    %v379 = vrot.slane %v371, 4
    %v380 = vrot.slane %v372, 4
    %v381 = vrot.slane %v373, 4
    %386 = vst [vmem:[#allocation2 + $0x60] sm:$0xf0] %v378
    %387 = vst [vmem:[#allocation2 + $0x68] sm:$0xf0] %v379
    %388 = vst [vmem:[#allocation2 + $0x70] sm:$0xf0] %v380
    %389 = vst [vmem:[#allocation2 + $0x78] sm:$0xf0] %v381
    %390 = vrot.lane.b32.xlu0 %v61, 111
    %v391 = vpop.permute.xlu0 %390
    %392 = vrot.lane.b32.xlu0 %v73, 111
    %v393 = vpop.permute.xlu0 %392
    %394 = vrot.lane.b32.xlu0 %v62, 111
    %v395 = vpop.permute.xlu0 %394
    %396 = vrot.lane.b32.xlu0 %v74, 111
    %v397 = vpop.permute.xlu0 %396
    %vm398 = vcmp.lt.s32.totalorder %v86, 111
    %v399 = vsel %vm398, %v395, %v397
    %v400 = vsel %vm398, %v393, %v395
    %v401 = vsel %vm398, %v391, %v393
    %v402 = vsel %vm398, %v397, %v391
    %v403 = vlaneseq
    %v404 = vshrl.u32 %v403, 7
    %v405 = vsub.s32 0, %v404
    %v406 = vrot.slane %v67, %v405
    %v407 = vlaneseq
    %v408 = vshrl.u32 %v407, 7
    %v409 = vsub.s32 0, %v408
    %v410 = vrot.slane %v68, %v409
    %v411 = vlaneseq
    %v412 = vshrl.u32 %v411, 7
    %v413 = vsub.s32 0, %v412
    %v414 = vrot.slane %v69, %v413
    %v415 = vlaneseq
    %v416 = vshrl.u32 %v415, 7
    %v417 = vsub.s32 0, %v416
    %v418 = vrot.slane %v70, %v417
    %v419 = vmul.f32 %v401, %v406
    %v420 = vmul.f32 %v400, %v410
    %v421 = vmul.f32 %v399, %v414
    %v422 = vmul.f32 %v402, %v418
    %423 = vst [vmem:[#allocation2 + $0x80] sm:$0xf] %v419
    %424 = vst [vmem:[#allocation2 + $0x88] sm:$0xf] %v420
    %425 = vst [vmem:[#allocation2 + $0x90] sm:$0xf] %v421
    %426 = vst [vmem:[#allocation2 + $0x98] sm:$0xf] %v422
    %v427 = vld [vmem:[#allocation2] sm:$0xff]
    %v428 = vld [vmem:[#allocation2 + $0x8] sm:$0xff]
    %v429 = vld [vmem:[#allocation2 + $0x10] sm:$0xff]
    %v430 = vld [vmem:[#allocation2 + $0x18] sm:$0xff]
    %v431 = vld [vmem:[#allocation2 + $0x20] sm:$0xff]
    %v432 = vld [vmem:[#allocation2 + $0x28] sm:$0xff]
    %v433 = vld [vmem:[#allocation2 + $0x30] sm:$0xff]
    %v434 = vld [vmem:[#allocation2 + $0x38] sm:$0xff]
    %v435 = vld [vmem:[#allocation2 + $0x40] sm:$0xff]
    %v436 = vld [vmem:[#allocation2 + $0x48] sm:$0xff]
    %v437 = vld [vmem:[#allocation2 + $0x50] sm:$0xff]
    %v438 = vld [vmem:[#allocation2 + $0x58] sm:$0xff]
    %v439 = vld [vmem:[#allocation2 + $0x60] sm:$0xff]
    %v440 = vld [vmem:[#allocation2 + $0x68] sm:$0xff]
    %v441 = vld [vmem:[#allocation2 + $0x70] sm:$0xff]
    %v442 = vld [vmem:[#allocation2 + $0x78] sm:$0xff]
    %v443 = vld [vmem:[#allocation2 + $0x80] sm:$0xf]
    %v444 = vld [vmem:[#allocation2 + $0x88] sm:$0xf]
    %v445 = vld [vmem:[#allocation2 + $0x90] sm:$0xf]
    %v446 = vld [vmem:[#allocation2 + $0x98] sm:$0xf]
    %v447 = vld [vmem:[#allocation3] sm:$0xff]
    %v448 = vld [vmem:[#allocation6] sm:$0xff]
    %v449 = vld [vmem:[#allocation6 + $0x8] sm:$0xff]
    %v450 = vld [vmem:[#allocation6 + $0x10] sm:$0xff]
    %v451 = vld [vmem:[#allocation6 + $0x18] sm:$0xff]
    %vm452 = vcmask 293888
    %v454 = vsel %vm452, %v447, 0
    %vm456 = vcmask 1043456
    %v458 = vsel %vm456, %v443, 0
    %v461 = vsel %vm456, %v444, 0
    %v464 = vsel %vm456, %v445, 0
    %v467 = vsel %vm456, %v446, 0
    %469 = vmatprep.subr.mxu0 0.0
    %470 = vmatpush1.msra.mxu0 0.0
    %471 = vmatprep.subr.mxu0 0.0
    %472 = vmatpush1.msra.mxu0 0.0
    %473 = vmatprep.subr.mxu0 0.0
    %474 = vmatpush1.msra.mxu0 0.0
    %475 = vmatprep.subr.mxu0 0.0
    %476 = vmatpush1.msra.mxu0 0.0
    %477 = vmatprep.subr.mxu0 0.0
    %478 = vmatpush1.msra.mxu0 0.0
    %479 = vmatprep.subr.mxu0 0.0
    %480 = vmatpush1.msra.mxu0 0.0
    %481 = vmatprep.subr.mxu0 0.0
    %482 = vmatpush1.msra.mxu0 0.0
    %483 = vmatprep.subr.mxu0 0.0
    %484 = vmatpush1.msra.mxu0 0.0
    %485 = vmatprep.subr.mxu0 0.0
    %486 = vmatpush1.msra.mxu0 0.0
    %487 = vmatprep.subr.mxu0 0.0
    %488 = vmatpush1.msra.mxu0 0.0
    %489 = vmatprep.subr.mxu0 0.0
    %490 = vmatpush1.msra.mxu0 0.0
    %491 = vmatprep.subr.mxu0 %v461
    %492 = vmatpush1.msra.mxu0 %v458
    %493 = vmatprep.subr.mxu0 %v440
    %494 = vmatpush1.msra.mxu0 %v439
    %495 = vmatprep.subr.mxu0 %v436
    %496 = vmatpush1.msra.mxu0 %v435
    %497 = vmatprep.subr.mxu0 %v432
    %498 = vmatpush1.msra.mxu0 %v431
    %499 = vmatprep.subr.mxu0 %v428
    %500 = vmatpush1.msra.mxu0 %v427
    %501 = vmatprep.subr.mxu0 0.0
    %502 = vmatpush2.msra.mxu0 0.0
    %503 = vmatprep.subr.mxu0 0.0
    %504 = vmatpush2.msra.mxu0 0.0
    %505 = vmatprep.subr.mxu0 0.0
    %506 = vmatpush2.msra.mxu0 0.0
    %507 = vmatprep.subr.mxu0 0.0
    %508 = vmatpush2.msra.mxu0 0.0
    %509 = vmatprep.subr.mxu0 0.0
    %510 = vmatpush2.msra.mxu0 0.0
    %511 = vmatprep.subr.mxu0 0.0
    %512 = vmatpush2.msra.mxu0 0.0
    %513 = vmatprep.subr.mxu0 0.0
    %514 = vmatpush2.msra.mxu0 0.0
    %515 = vmatprep.subr.mxu0 0.0
    %516 = vmatpush2.msra.mxu0 0.0
    %517 = vmatprep.subr.mxu0 0.0
    %518 = vmatpush2.msra.mxu0 0.0
    %519 = vmatprep.subr.mxu0 0.0
    %520 = vmatpush2.msra.mxu0 0.0
    %521 = vmatprep.subr.mxu0 0.0
    %522 = vmatpush2.msra.mxu0 0.0
    %523 = vmatprep.subr.mxu0 0.0
    %524 = vmatpush2.msra.mxu0 0.0
    %525 = vmatprep.subr.mxu0 0.0
    %526 = vmatpush2.msra.mxu0 0.0
    %527 = vmatprep.subr.mxu0 0.0
    %528 = vmatpush2.msra.mxu0 0.0
    %529 = vmatprep.subr.mxu0 0.0
    %530 = vmatpush2.msra.mxu0 0.0
    %531 = vmatprep.subr.mxu0 0.0
    %532 = vmatpush2.msra.mxu0 0.0
    %533 = vmatprep.mubr.f32.mxu0 0.0
    %534 = vmatmul.mubr.f32.gmra.mxu0 %v454
    %v535 = vpop.f32.mrf.mxu0
    %v536 = vadd.f32 %v448, %v535
    %v537 = vpop.f32.mrf.mxu0
    %v538 = vadd.f32 %v449, %v537
    %539 = vdwg.mxu0
    %540 = vmatprep.subr.mxu0 0.0
    %541 = vmatpush1.msra.mxu0 0.0
    %542 = vmatprep.subr.mxu0 0.0
    %543 = vmatpush1.msra.mxu0 0.0
    %544 = vmatprep.subr.mxu0 0.0
    %545 = vmatpush1.msra.mxu0 0.0
    %546 = vmatprep.subr.mxu0 0.0
    %547 = vmatpush1.msra.mxu0 0.0
    %548 = vmatprep.subr.mxu0 0.0
    %549 = vmatpush1.msra.mxu0 0.0
    %550 = vmatprep.subr.mxu0 0.0
    %551 = vmatpush1.msra.mxu0 0.0
    %552 = vmatprep.subr.mxu0 0.0
    %553 = vmatpush1.msra.mxu0 0.0
    %554 = vmatprep.subr.mxu0 0.0
    %555 = vmatpush1.msra.mxu0 0.0
    %556 = vmatprep.subr.mxu0 0.0
    %557 = vmatpush1.msra.mxu0 0.0
    %558 = vmatprep.subr.mxu0 0.0
    %559 = vmatpush1.msra.mxu0 0.0
    %560 = vmatprep.subr.mxu0 0.0
    %561 = vmatpush1.msra.mxu0 0.0
    %562 = vmatprep.subr.mxu0 %v467
    %563 = vmatpush1.msra.mxu0 %v464
    %564 = vmatprep.subr.mxu0 %v442
    %565 = vmatpush1.msra.mxu0 %v441
    %566 = vmatprep.subr.mxu0 %v438
    %567 = vmatpush1.msra.mxu0 %v437
    %568 = vmatprep.subr.mxu0 %v434
    %569 = vmatpush1.msra.mxu0 %v433
    %570 = vmatprep.subr.mxu0 %v430
    %571 = vmatpush1.msra.mxu0 %v429
    %572 = vmatprep.subr.mxu0 0.0
    %573 = vmatpush2.msra.mxu0 0.0
    %574 = vmatprep.subr.mxu0 0.0
    %575 = vmatpush2.msra.mxu0 0.0
    %576 = vmatprep.subr.mxu0 0.0
    %577 = vmatpush2.msra.mxu0 0.0
    %578 = vmatprep.subr.mxu0 0.0
    %579 = vmatpush2.msra.mxu0 0.0
    %580 = vmatprep.subr.mxu0 0.0
    %581 = vmatpush2.msra.mxu0 0.0
    %582 = vmatprep.subr.mxu0 0.0
    %583 = vmatpush2.msra.mxu0 0.0
    %584 = vmatprep.subr.mxu0 0.0
    %585 = vmatpush2.msra.mxu0 0.0
    %586 = vmatprep.subr.mxu0 0.0
    %587 = vmatpush2.msra.mxu0 0.0
    %588 = vmatprep.subr.mxu0 0.0
    %589 = vmatpush2.msra.mxu0 0.0
    %590 = vmatprep.subr.mxu0 0.0
    %591 = vmatpush2.msra.mxu0 0.0
    %592 = vmatprep.subr.mxu0 0.0
    %593 = vmatpush2.msra.mxu0 0.0
    %594 = vmatprep.subr.mxu0 0.0
    %595 = vmatpush2.msra.mxu0 0.0
    %596 = vmatprep.subr.mxu0 0.0
    %597 = vmatpush2.msra.mxu0 0.0
    %598 = vmatprep.subr.mxu0 0.0
    %599 = vmatpush2.msra.mxu0 0.0
    %600 = vmatprep.subr.mxu0 0.0
    %601 = vmatpush2.msra.mxu0 0.0
    %602 = vmatprep.subr.mxu0 0.0
    %603 = vmatpush2.msra.mxu0 0.0
    %604 = vmatprep.mubr.f32.mxu0 0.0
    %605 = vmatmul.mubr.f32.gmra.mxu0 %v454
    %v606 = vpop.f32.mrf.mxu0
    %v607 = vadd.f32 %v450, %v606
    %v608 = vpop.f32.mrf.mxu0
    %v609 = vadd.f32 %v451, %v608
    %610 = vdwg.mxu0
    %v611 = vadd.f32 %v536, %v538
    %v612 = vadd.f32 %v611, %v607
    %v613 = vadd.f32 %v612, %v609
    %614 = vadd.xlane.f32.xlu0 %v613
    %v615 = vpop.xlane.xlu0 %614
    %v616 = vmul.f32 %v615, 0.001953125
    %v617 = vsub.f32 %v536, %v616
    %v618 = vsub.f32 %v538, %v616
    %v619 = vsub.f32 %v607, %v616
    %v620 = vsub.f32 %v609, %v616
    %v621 = vmul.f32 %v617, %v617
    %v622 = vmul.f32 %v618, %v618
    %v623 = vmul.f32 %v619, %v619
    %v624 = vmul.f32 %v620, %v620
    %v625 = vadd.f32 %v621, %v622
    %v626 = vadd.f32 %v625, %v623
    %v627 = vadd.f32 %v626, %v624
    %628 = vadd.xlane.f32.xlu0 %v627
    %v629 = vpop.xlane.xlu0 %628
    %v630 = vmul.f32 %v629, 0.001953125
    %v631 = vadd.f32 %v630, 1e-05
    %v632 = vrsqrt.pop %v631
    %v633 = vld [vmem:[%s4] sm:$0xff]
    %v634 = vmul.f32 %v632, %v633
    %v635 = vld [vmem:[%s5] sm:$0xff]
    %v636 = vmul.f32 %v616, %v634
    %v637 = vsub.f32 %v635, %v636
    %639 = vset.pattern.permute.xlu0 0
    %640 = vperm.xlu0 %639, %v634
    %v641 = vpop.permute.xlu0 %640
    %v643 = vmul.f32 %v536, %v641
    %v644 = vmul.f32 %v538, %v641
    %v645 = vmul.f32 %v607, %v641
    %v646 = vmul.f32 %v609, %v641
    %648 = vset.pattern.permute.xlu0 0
    %649 = vperm.xlu0 %648, %v637
    %v650 = vpop.permute.xlu0 %649
    %v652 = vadd.f32 %v643, %v650
    %v653 = vadd.f32 %v644, %v650
    %v654 = vadd.f32 %v645, %v650
    %v655 = vadd.f32 %v646, %v650
    %v656 = vmax.f32 %v652, 0.0
    %v657 = vmax.f32 %v653, 0.0
    %v658 = vmax.f32 %v654, 0.0
    %v659 = vmax.f32 %v655, 0.0
    %660 = vst [vmem:[#allocation9] sm:$0xff] %v656
    %661 = vst [vmem:[#allocation9 + $0x8] sm:$0xff] %v657
    %662 = vst [vmem:[#allocation9 + $0x10] sm:$0xff] %v658
    %663 = vst [vmem:[#allocation9 + $0x18] sm:$0xff] %v659
    // Predicated region
    $region38: #{tpu_custom_call.1} parent=1 // pred_check
      _
    $region39: #{tpu_custom_call.1} parent=1 // pred_check_branch
      %665 = sbr.rel (0) target = $region41
    $region40: #{tpu_custom_call.1} parent=1 // pred_region
      %s667 = ssub.s32 512, 512
      %668 = vsyncadd [#allocation5], %s667
      %s670 = sshll.u32 [#allocation9], 4
      %s671 = int_to_ptr.vmem [resolvable:$true] %s670
      %673 = dma.vmem_to_hbm [thread:$0]  %s671, 512, %s6, [#allocation5]
    $region41: #{tpu_custom_call.1} parent=1 // pred_fallthru
      _
    // Predicated region
    $region42: #{tpu_custom_call.1} parent=1 // pred_check
      _
    $region43: #{tpu_custom_call.1} parent=1 // pred_check_branch
      %675 = sbr.rel (0) target = $region45
    $region44: #{tpu_custom_call.1} parent=1 // pred_region
      %676 = dma.done [#allocation5], 512
    $region45: #{tpu_custom_call.1} parent=1 // pred_fallthru
      _
    %677 = vsyncpa [#allocation4], 1
    %678 = vsyncpa [#allocation7], 1
    %679 = vsyncpa [#allocation5], 1

</llo_original>
